<compile_context>
chip_gen: v7x
topology: tpu7x:2x2x1
jax: 0.10.0
libtpu: 0.0.40
codegen_flags: <defaults>
</compile_context>

<pallas_src>
import math

import jax
import jax.numpy as jnp
from jax.experimental import pallas as pl
from jax.experimental.pallas import tpu as pltpu


def _round_up(x, m):
    return ((x + m - 1) // m) * m


def critic_kernel(x_ref, w1_ref, b1_ref, w2_ref, b2_ref, w3_ref, b3_ref, o_ref):
    # Activations are streamed in f32 and cast to the weight dtype in-kernel
    # (VPU cast hides under the MXU); f32 MXU accumulation, f32 bias add + ReLU.
    x = x_ref[...].astype(w1_ref.dtype)
    # fc1 + ReLU
    h1 = jnp.dot(x, w1_ref[...], preferred_element_type=jnp.float32)
    h1 = jnp.maximum(h1 + b1_ref[...], 0.0).astype(w2_ref.dtype)
    # fc2 + ReLU
    h2 = jnp.dot(h1, w2_ref[...], preferred_element_type=jnp.float32)
    h2 = jnp.maximum(h2 + b2_ref[...], 0.0).astype(w3_ref.dtype)
    # fc3 (no activation): lane-dense (TB, A_pad) compute stays in VMEM; only the
    # real action_size columns are stored to HBM.
    out = jnp.dot(h2, w3_ref[...], preferred_element_type=jnp.float32) + b3_ref[...]
    o_ref[...] = out[:, : o_ref.shape[1]].astype(o_ref.dtype)


def critic_forward(state, params, *, block_rows=8192):
    """state: (B, state_size) float32. Returns (B, action_size) float32 Q-values."""
    w1, b1 = params["w1"], params["b1"]
    w2, b2 = params["w2"], params["b2"]
    w3, b3 = params["w3"], params["b3"]
    state_size = params["state_size"]
    action_size = params["action_size"]

    B = state.shape[0]
    assert state.shape[1] == state_size
    S = state_size
    H_pad = w2.shape[0]
    A_pad = w3.shape[1]

    # Batch tile: multiple of 8 (sublane); big tiles amortize ~0.35us/grid-step.
    TB = max(8, min(_round_up(block_rows, 8), _round_up(B, 8)))
    grid = (pl.cdiv(B, TB),)

    state = state.astype(jnp.float32)

    # VMEM budget: double-buffered state/output blocks + resident weights +
    # (TB, H_pad) f32 intermediates, 2x headroom, capped for v7x's 64 MiB VMEM.
    w_itemsize = jnp.dtype(w1.dtype).itemsize
    est = (2 * TB * S * 4                                   # state blocks (f32, dbl-buf)
           + 2 * TB * action_size * 4                       # output blocks (f32, dbl-buf)
           + 2 * TB * H_pad * 4                             # h1 / h2 intermediates (f32)
           + TB * H_pad * w_itemsize                        # cast copies of h1/h2
           + (S * H_pad + H_pad * H_pad + H_pad * A_pad) * w_itemsize
           + 3 * H_pad * 4)
    vmem_limit = int(min(48 * 1024 * 1024, max(4 * 1024 * 1024, 2 * est)))

    out = pl.pallas_call(
        critic_kernel,
        out_shape=jax.ShapeDtypeStruct((B, action_size), jnp.float32),
        grid=grid,
        in_specs=[
            pl.BlockSpec((TB, S), lambda i: (i, 0)),          # state: streamed per tile
            pl.BlockSpec((S, H_pad), lambda i: (0, 0)),       # weights: VMEM-resident
            pl.BlockSpec((1, H_pad), lambda i: (0, 0)),
            pl.BlockSpec((H_pad, H_pad), lambda i: (0, 0)),
            pl.BlockSpec((1, H_pad), lambda i: (0, 0)),
            pl.BlockSpec((H_pad, A_pad), lambda i: (0, 0)),
            pl.BlockSpec((1, A_pad), lambda i: (0, 0)),
        ],
        out_specs=pl.BlockSpec((TB, action_size), lambda i: (i, 0)),
        compiler_params=pltpu.CompilerParams(
            dimension_semantics=("parallel",),   # shard batch tiles across v7x's 2 TCs
            vmem_limit_bytes=vmem_limit,
        ),
    )(state, w1, b1, w2, b2, w3, b3)

    return out


def init_critic_params(state_size, action_size, hidden_size=32, seed=0,
                       param_dtype=jnp.bfloat16):
    """Deterministic init mimicking the PyTorch module's reset_parameters().

    hidden_init uses weight.size()[0] (== out_features) as 'fan_in', so fc1/fc2
    weights ~ U(-1/sqrt(hidden), 1/sqrt(hidden)) and fc3 ~ U(-3e-3, 3e-3).
    Biases keep PyTorch's default Linear init U(-1/sqrt(in_features), +...).
    Weights are stored transposed (in_features, out_features); only the hidden /
    output feature dims are zero-padded to 128 lanes (the input-feature dim and
    the HBM-facing output stay at their natural sizes). Biases are kept f32.
    """
    key = jax.random.PRNGKey(seed)
    k = jax.random.split(key, 6)

    lim_h = 1.0 / math.sqrt(hidden_size)
    w1 = jax.random.uniform(k[0], (state_size, hidden_size), jnp.float32, -lim_h, lim_h)
    w2 = jax.random.uniform(k[1], (hidden_size, hidden_size), jnp.float32, -lim_h, lim_h)
    w3 = jax.random.uniform(k[2], (hidden_size, action_size), jnp.float32, -3e-3, 3e-3)
    b1 = jax.random.uniform(k[3], (hidden_size,), jnp.float32,
                            -1.0 / math.sqrt(state_size), 1.0 / math.sqrt(state_size))
    b2 = jax.random.uniform(k[4], (hidden_size,), jnp.float32, -lim_h, lim_h)
    b3 = jax.random.uniform(k[5], (action_size,), jnp.float32, -lim_h, lim_h)

    H_pad = _round_up(hidden_size, 128)  # lane-dense hidden (free MXU filler)
    A_pad = _round_up(action_size, 128)  # lane-dense fc3 compute (sliced in-kernel)

    def pad2(a, r, c):
        return jnp.zeros((r, c), jnp.float32).at[:a.shape[0], :a.shape[1]].set(a)

    return {
        "w1": pad2(w1, state_size, H_pad).astype(param_dtype),
        "w2": pad2(w2, H_pad, H_pad).astype(param_dtype),
        "w3": pad2(w3, H_pad, A_pad).astype(param_dtype),
        "b1": pad2(b1[None, :], 1, H_pad),   # biases stay f32
        "b2": pad2(b2[None, :], 1, H_pad),
        "b3": pad2(b3[None, :], 1, A_pad),
        "state_size": state_size,
        "action_size": action_size,
        "hidden_size": hidden_size,
    }


def critic_reference(state, params):
    """Pure-JAX reference that mirrors the kernel's compute path exactly."""
    w1, w2, w3 = params["w1"], params["w2"], params["w3"]
    b1, b2, b3 = params["b1"], params["b2"], params["b3"]
    A = params["action_size"]
    dt = w1.dtype
    x = state.astype(dt)
    h1 = jnp.maximum(jnp.dot(x, w1, preferred_element_type=jnp.float32) + b1, 0.0).astype(dt)
    h2 = jnp.maximum(jnp.dot(h1, w2, preferred_element_type=jnp.float32) + b2, 0.0).astype(dt)
    out = jnp.dot(h2, w3, preferred_element_type=jnp.float32) + b3
    return out[:, :A].astype(jnp.float32)


if __name__ == "__main__":
    batch = 2
    state_size = 4
    action_size = 2
    hidden_size = 32

    key = jax.random.PRNGKey(0)
    k_state, k_big = jax.random.split(key)

    # --- demo-sized f32 run (module's natural precision / shapes) ---
    params_f32 = init_critic_params(state_size, action_size, hidden_size, seed=1,
                                    param_dtype=jnp.float32)
    state = jax.random.normal(k_state, (batch, state_size), dtype=jnp.float32)
    out = critic_forward(state, params_f32)
    jax.block_until_ready(out)
    assert out.shape == (batch, action_size)
    ref = critic_reference(state, params_f32)
    assert jnp.allclose(out, ref, atol=1e-5), "f32 mismatch vs reference"

    # --- larger batch exercising multi-step batch tiling + ragged (masked) tail ---
    big_state = jax.random.normal(k_big, (300, state_size), dtype=jnp.float32)
    out_big = critic_forward(big_state, params_f32, block_rows=128)
    jax.block_until_ready(out_big)
    assert out_big.shape == (300, action_size)
    ref_big = critic_reference(big_state, params_f32)
    assert jnp.allclose(out_big, ref_big, atol=1e-5), "tiled f32 mismatch vs reference"

    # --- default bf16 weights (v6e/v7x recipe): f32 state streamed + cast in-kernel,
    #     f32 MXU accumulation / bias add / ReLU preserve accuracy ---
    params_bf16 = init_critic_params(state_size, action_size, hidden_size, seed=1)
    out_bf16 = critic_forward(big_state, params_bf16, block_rows=128)
    jax.block_until_ready(out_bf16)
    assert out_bf16.shape == (300, action_size)
    ref_bf16 = critic_reference(big_state, params_bf16)
    assert jnp.allclose(out_bf16, ref_bf16, atol=2e-3, rtol=2e-2), "bf16 mismatch vs reference"
    assert jnp.allclose(out_bf16, ref_big, atol=5e-2, rtol=5e-2), "bf16 vs f32 drift too large"

    print("KERNEL_OK")
</pallas_src>

<mosaic_0001>
module attributes {stable_mosaic.version = 11 : i64} {
  func.func @critic_kernel(%arg0: i32, %arg1: memref<8x4xf32, #tpu.memory_space<vmem>>, %arg2: memref<4x128xf32, #tpu.memory_space<vmem>>, %arg3: memref<1x128xf32, #tpu.memory_space<vmem>>, %arg4: memref<128x128xf32, #tpu.memory_space<vmem>>, %arg5: memref<1x128xf32, #tpu.memory_space<vmem>>, %arg6: memref<128x128xf32, #tpu.memory_space<vmem>>, %arg7: memref<1x128xf32, #tpu.memory_space<vmem>>, %arg8: memref<8x2xf32, #tpu.memory_space<vmem>>) attributes {dimension_semantics = [#tpu.dimension_semantics<parallel>], iteration_bounds = array<i64: 1>, scalar_prefetch = 0 : i64, scratch_operands = 0 : i64, tpu.core_type = #tpu.core_type<tc>, window_params = [{transform_indices = @transform_0, window_bounds = array<i64: 8, 4>}, {pipeline_mode = #tpu.pipeline_mode<synchronous>, transform_indices = @transform_1, window_bounds = array<i64: 4, 128>}, {pipeline_mode = #tpu.pipeline_mode<synchronous>, transform_indices = @transform_2, window_bounds = array<i64: 1, 128>}, {pipeline_mode = #tpu.pipeline_mode<synchronous>, transform_indices = @transform_3, window_bounds = array<i64: 128, 128>}, {pipeline_mode = #tpu.pipeline_mode<synchronous>, transform_indices = @transform_4, window_bounds = array<i64: 1, 128>}, {pipeline_mode = #tpu.pipeline_mode<synchronous>, transform_indices = @transform_5, window_bounds = array<i64: 128, 128>}, {pipeline_mode = #tpu.pipeline_mode<synchronous>, transform_indices = @transform_6, window_bounds = array<i64: 1, 128>}, {transform_indices = @transform_7, window_bounds = array<i64: 8, 2>}]} {
    %c0 = arith.constant 0 : index
    %c0_0 = arith.constant 0 : index
    %0 = vector.load %arg1[%c0, %c0_0] : memref<8x4xf32, #tpu.memory_space<vmem>>, vector<8x4xf32>
    %c0_1 = arith.constant 0 : index
    %c0_2 = arith.constant 0 : index
    %1 = vector.load %arg2[%c0_1, %c0_2] : memref<4x128xf32, #tpu.memory_space<vmem>>, vector<4x128xf32>
    %cst = arith.constant dense<0.000000e+00> : vector<8x128xf32>
    %2 = tpu.matmul %0, %1, %cst {dimension_numbers = #tpu.dot_dimension_numbers<[1], [0], [0], [1], [0, 0, 1, 1], [], []>} : vector<8x4xf32>, vector<4x128xf32>, vector<8x128xf32> -> vector<8x128xf32>
    %c0_3 = arith.constant 0 : index
    %c0_4 = arith.constant 0 : index
    %3 = vector.load %arg3[%c0_3, %c0_4] : memref<1x128xf32, #tpu.memory_space<vmem>>, vector<1x128xf32>
    %4 = vector.broadcast %3 : vector<1x128xf32> to vector<8x128xf32>
    %5 = arith.addf %2, %4 : vector<8x128xf32>
    %cst_5 = arith.constant 0.000000e+00 : f32
    %6 = vector.broadcast %cst_5 : f32 to vector<8x128xf32>
    %7 = arith.maximumf %5, %6 : vector<8x128xf32>
    %c0_6 = arith.constant 0 : index
    %c0_7 = arith.constant 0 : index
    %8 = vector.load %arg4[%c0_6, %c0_7] : memref<128x128xf32, #tpu.memory_space<vmem>>, vector<128x128xf32>
    %cst_8 = arith.constant dense<0.000000e+00> : vector<8x128xf32>
    %9 = tpu.matmul %7, %8, %cst_8 {dimension_numbers = #tpu.dot_dimension_numbers<[1], [0], [0], [1], [0, 0, 1, 1], [], []>} : vector<8x128xf32>, vector<128x128xf32>, vector<8x128xf32> -> vector<8x128xf32>
    %c0_9 = arith.constant 0 : index
    %c0_10 = arith.constant 0 : index
    %10 = vector.load %arg5[%c0_9, %c0_10] : memref<1x128xf32, #tpu.memory_space<vmem>>, vector<1x128xf32>
    %11 = vector.broadcast %10 : vector<1x128xf32> to vector<8x128xf32>
    %12 = arith.addf %9, %11 : vector<8x128xf32>
    %cst_11 = arith.constant 0.000000e+00 : f32
    %13 = vector.broadcast %cst_11 : f32 to vector<8x128xf32>
    %14 = arith.maximumf %12, %13 : vector<8x128xf32>
    %c0_12 = arith.constant 0 : index
    %c0_13 = arith.constant 0 : index
    %15 = vector.load %arg6[%c0_12, %c0_13] : memref<128x128xf32, #tpu.memory_space<vmem>>, vector<128x128xf32>
    %cst_14 = arith.constant dense<0.000000e+00> : vector<8x128xf32>
    %16 = tpu.matmul %14, %15, %cst_14 {dimension_numbers = #tpu.dot_dimension_numbers<[1], [0], [0], [1], [0, 0, 1, 1], [], []>} : vector<8x128xf32>, vector<128x128xf32>, vector<8x128xf32> -> vector<8x128xf32>
    %c0_15 = arith.constant 0 : index
    %c0_16 = arith.constant 0 : index
    %17 = vector.load %arg7[%c0_15, %c0_16] : memref<1x128xf32, #tpu.memory_space<vmem>>, vector<1x128xf32>
    %18 = vector.broadcast %17 : vector<1x128xf32> to vector<8x128xf32>
    %19 = arith.addf %16, %18 : vector<8x128xf32>
    %20 = vector.extract_strided_slice %19 {offsets = [0, 0], sizes = [8, 2], strides = [1, 1]} : vector<8x128xf32> to vector<8x2xf32>
    %c0_17 = arith.constant 0 : index
    %c0_18 = arith.constant 0 : index
    %21 = vector.load %arg8[%c0_17, %c0_18] : memref<8x2xf32, #tpu.memory_space<vmem>>, vector<8x2xf32>
    tpu.vector_store %arg8[%c0_17, %c0_18], %20 {strides = array<i32>} : memref<8x2xf32, #tpu.memory_space<vmem>>, vector<8x2xf32>,
    return
  }
  func.func @transform_0(%arg0: i32) -> (i32, i32) {
    %c0_i32 = arith.constant 0 : i32
    %c0_i32_0 = arith.constant 0 : i32
    return %arg0, %c0_i32 : i32, i32
  }
  func.func @transform_1(%arg0: i32) -> (i32, i32) {
    %c0_i32 = arith.constant 0 : i32
    %c0_i32_0 = arith.constant 0 : i32
    %c0_i32_1 = arith.constant 0 : i32
    return %c0_i32, %c0_i32_0 : i32, i32
  }
  func.func @transform_2(%arg0: i32) -> (i32, i32) {
    %c0_i32 = arith.constant 0 : i32
    %c0_i32_0 = arith.constant 0 : i32
    %c0_i32_1 = arith.constant 0 : i32
    return %c0_i32, %c0_i32_0 : i32, i32
  }
  func.func @transform_3(%arg0: i32) -> (i32, i32) {
    %c0_i32 = arith.constant 0 : i32
    %c0_i32_0 = arith.constant 0 : i32
    %c0_i32_1 = arith.constant 0 : i32
    return %c0_i32, %c0_i32_0 : i32, i32
  }
  func.func @transform_4(%arg0: i32) -> (i32, i32) {
    %c0_i32 = arith.constant 0 : i32
    %c0_i32_0 = arith.constant 0 : i32
    %c0_i32_1 = arith.constant 0 : i32
    return %c0_i32, %c0_i32_0 : i32, i32
  }
  func.func @transform_5(%arg0: i32) -> (i32, i32) {
    %c0_i32 = arith.constant 0 : i32
    %c0_i32_0 = arith.constant 0 : i32
    %c0_i32_1 = arith.constant 0 : i32
    return %c0_i32, %c0_i32_0 : i32, i32
  }
  func.func @transform_6(%arg0: i32) -> (i32, i32) {
    %c0_i32 = arith.constant 0 : i32
    %c0_i32_0 = arith.constant 0 : i32
    %c0_i32_1 = arith.constant 0 : i32
    return %c0_i32, %c0_i32_0 : i32, i32
  }
  func.func @transform_7(%arg0: i32) -> (i32, i32) {
    %c0_i32 = arith.constant 0 : i32
    %c0_i32_0 = arith.constant 0 : i32
    return %arg0, %c0_i32 : i32, i32
  }
}

</mosaic_0001>

<llo_original>
// kernel: tpu_custom_call.1
$region0: #{tpu_custom_call.1}
  #allocation0 [shape = 'u32[]', space=smem, size = 0x4, offset = 0x4, fixed_abs, tag = 'smem constant byte address 0x4 - core index']
  #allocation1 [shape = 'u32[144,128]{1,0:T(1,128)}', space=vmem, size = 0x12000, scoped, tag = 'internal scratch']
  %s0 = inlined_call_operand.hbm [shape: f32[2,4], index: 0, kind: input, shape index: {}]
  %s1 = inlined_call_operand.hbm [shape: f32[4,128], index: 1, kind: input, shape index: {}]
  %s2 = inlined_call_operand.vmem [shape: f32[1,128], index: 2, kind: input, shape index: {}]
  %s3 = inlined_call_operand.hbm [shape: f32[128,128], index: 3, kind: input, shape index: {}]
  %s4 = inlined_call_operand.vmem [shape: f32[1,128], index: 4, kind: input, shape index: {}]
  %s5 = inlined_call_operand.hbm [shape: f32[128,128], index: 5, kind: input, shape index: {}]
  %s6 = inlined_call_operand.vmem [shape: f32[1,128], index: 6, kind: input, shape index: {}]
  %s7 = inlined_call_operand.hbm [shape: f32[2,2], index: 7, kind: output, shape index: {}]
  %s8 = sld [smem:[#allocation0]]
  $region54: #{tpu_custom_call.1} parent=0
    _
  %s10 = ssub.s32 1, %s8
  %s11 = scalar_select 0, %s10, %s8
  $region1: #{tpu_custom_call.1} parent=0
    #allocation2 [shape = 'u8[4096]{0}', space=vmem, size = 0x1000, scoped, tag = 'input window, operand 0, single buffered']
    #allocation3 [shape = 's32[1]{0}', space=sflag, size = 0x4, scoped, tag = 'scoped memory for tpu_custom_call.1']
    #allocation4 [shape = 's32[1]{0}', space=sflag, size = 0x4, scoped, tag = 'scoped memory for tpu_custom_call.1']
    #allocation5 [shape = 'u8[2048]{0}', space=vmem, size = 0x800, scoped, tag = 'input window, operand 1, single buffered']
    #allocation6 [shape = 's32[1]{0}', space=sflag, size = 0x4, scoped, tag = 'scoped memory for tpu_custom_call.1']
    #allocation7 [shape = 'u8[65536]{0}', space=vmem, size = 0x10000, scoped, tag = 'input window, operand 3, single buffered']
    #allocation8 [shape = 'u8[65536]{0}', space=vmem, size = 0x10000, scoped, tag = 'input window, operand 5, single buffered']
    #allocation9 [shape = 's32[1]{0}', space=sflag, size = 0x4, scoped, tag = 'scoped memory for tpu_custom_call.1']
    #allocation10 [shape = 'u8[4096]{0}', space=vmem, size = 0x1000, scoped, tag = 'output window, operand 0, single buffered']
    %12 = vsyncpa [#allocation3], 0
    %13 = vsyncpa [#allocation6], 0
    %14 = vsyncpa [#allocation9], 0
    %15 = vsyncpa [#allocation4], 0
    // Predicated region
    $region2: #{tpu_custom_call.1} parent=1 // pred_check
      _
    $region3: #{tpu_custom_call.1} parent=1 // pred_check_branch
      %17 = sbr.rel (0) target = $region5
    $region4: #{tpu_custom_call.1} parent=1 // pred_region
      %s19 = ssub.s32 128, 32
      %20 = vsyncadd [#allocation3], %s19
      %s21 = sshll.u32 [#allocation2], 4
      %s22 = int_to_ptr.vmem [resolvable:$true] %s21
      %27 = dma.hbm_to_vmem [thread:$0]  %s0, 32, %s22, [#allocation3], 32, 32, 2
    $region5: #{tpu_custom_call.1} parent=1 // pred_fallthru
      _
    // Predicated region
    $region6: #{tpu_custom_call.1} parent=1 // pred_check
      _
    $region7: #{tpu_custom_call.1} parent=1 // pred_check_branch
      %29 = sbr.rel (0) target = $region9
    $region8: #{tpu_custom_call.1} parent=1 // pred_region
      %s31 = ssub.s32 64, 64
      %32 = vsyncadd [#allocation6], %s31
      %s34 = sshll.u32 [#allocation5], 4
      %s35 = int_to_ptr.vmem [resolvable:$true] %s34
      %37 = dma.hbm_to_vmem [thread:$0]  %s1, 64, %s35, [#allocation6]
    $region9: #{tpu_custom_call.1} parent=1 // pred_fallthru
      _
    // Predicated region
    $region10: #{tpu_custom_call.1} parent=1 // pred_check
      _
    $region11: #{tpu_custom_call.1} parent=1 // pred_check_branch
      %39 = sbr.rel (0) target = $region13
    $region12: #{tpu_custom_call.1} parent=1 // pred_region
      _
    $region13: #{tpu_custom_call.1} parent=1 // pred_fallthru
      _
    // Predicated region
    $region14: #{tpu_custom_call.1} parent=1 // pred_check
      _
    $region15: #{tpu_custom_call.1} parent=1 // pred_check_branch
      %41 = sbr.rel (0) target = $region17
    $region16: #{tpu_custom_call.1} parent=1 // pred_region
      %s43 = ssub.s32 2048, 2048
      %44 = vsyncadd [#allocation6], %s43
      %s45 = sshll.u32 [#allocation7], 4
      %s46 = int_to_ptr.vmem [resolvable:$true] %s45
      %51 = dma.hbm_to_vmem [thread:$0]  %s3, 2048, %s46, [#allocation6], 128, 128, 8
    $region17: #{tpu_custom_call.1} parent=1 // pred_fallthru
      _
    // Predicated region
    $region18: #{tpu_custom_call.1} parent=1 // pred_check
      _
    $region19: #{tpu_custom_call.1} parent=1 // pred_check_branch
      %53 = sbr.rel (0) target = $region21
    $region20: #{tpu_custom_call.1} parent=1 // pred_region
      _
    $region21: #{tpu_custom_call.1} parent=1 // pred_fallthru
      _
    // Predicated region
    $region22: #{tpu_custom_call.1} parent=1 // pred_check
      _
    $region23: #{tpu_custom_call.1} parent=1 // pred_check_branch
      %55 = sbr.rel (0) target = $region25
    $region24: #{tpu_custom_call.1} parent=1 // pred_region
      %s57 = ssub.s32 2048, 2048
      %58 = vsyncadd [#allocation9], %s57
      %s59 = sshll.u32 [#allocation8], 4
      %s60 = int_to_ptr.vmem [resolvable:$true] %s59
      %65 = dma.hbm_to_vmem [thread:$0]  %s5, 2048, %s60, [#allocation9], 128, 128, 8
    $region25: #{tpu_custom_call.1} parent=1 // pred_fallthru
      _
    // Predicated region
    $region26: #{tpu_custom_call.1} parent=1 // pred_check
      _
    $region27: #{tpu_custom_call.1} parent=1 // pred_check_branch
      %67 = sbr.rel (0) target = $region29
    $region28: #{tpu_custom_call.1} parent=1 // pred_region
      _
    $region29: #{tpu_custom_call.1} parent=1 // pred_fallthru
      _
    // Predicated region
    $region30: #{tpu_custom_call.1} parent=1 // pred_check
      _
    $region31: #{tpu_custom_call.1} parent=1 // pred_check_branch
      %69 = sbr.rel (0) target = $region33
    $region32: #{tpu_custom_call.1} parent=1 // pred_region
      %70 = dma.done [#allocation3], 128
    $region33: #{tpu_custom_call.1} parent=1 // pred_fallthru
      _
    // Predicated region
    $region34: #{tpu_custom_call.1} parent=1 // pred_check
      _
    $region35: #{tpu_custom_call.1} parent=1 // pred_check_branch
      %72 = sbr.rel (0) target = $region37
    $region36: #{tpu_custom_call.1} parent=1 // pred_region
      %73 = dma.done [#allocation6], 64
    $region37: #{tpu_custom_call.1} parent=1 // pred_fallthru
      _
    // Predicated region
    $region38: #{tpu_custom_call.1} parent=1 // pred_check
      _
    $region39: #{tpu_custom_call.1} parent=1 // pred_check_branch
      %75 = sbr.rel (0) target = $region41
    $region40: #{tpu_custom_call.1} parent=1 // pred_region
      %76 = dma.done [#allocation6], 2048
    $region41: #{tpu_custom_call.1} parent=1 // pred_fallthru
      _
    // Predicated region
    $region42: #{tpu_custom_call.1} parent=1 // pred_check
      _
    $region43: #{tpu_custom_call.1} parent=1 // pred_check_branch
      %78 = sbr.rel (0) target = $region45
    $region44: #{tpu_custom_call.1} parent=1 // pred_region
      %79 = dma.done [#allocation9], 2048
    $region45: #{tpu_custom_call.1} parent=1 // pred_fallthru
      _
    %v80 = vld [vmem:[#allocation2] sm:$0xff]
    %v81 = vld [vmem:[#allocation5] sm:$0xf]
    %v82 = vld [vmem:[%s2] sm:$0x1]
    %v84 = vlaneseq
    %v85 = vshrl.u32 %v84, 7
    %v86 = vsub.s32 0, %v85
    %v87 = vrot.slane %v82, %v86
    %vm89 = vcmask 31744
    %v91 = vsel %vm89, %v80, 0
    %vm93 = vcmask 1043456
    %v95 = vsel %vm93, %v81, 0
    %97 = vmatprep.subr.mxu0 0.0
    %98 = vmatpush1.msra.mxu0 %v95
    %99 = vmatprep.subr.mxu0 0.0
    %100 = vmatpush1.msra.mxu0 0.0
    %101 = vmatprep.subr.mxu0 0.0
    %102 = vmatpush1.msra.mxu0 0.0
    %103 = vmatprep.subr.mxu0 0.0
    %104 = vmatpush1.msra.mxu0 0.0
    %105 = vmatprep.subr.mxu0 0.0
    %106 = vmatpush1.msra.mxu0 0.0
    %107 = vmatprep.subr.mxu0 0.0
    %108 = vmatpush1.msra.mxu0 0.0
    %109 = vmatprep.subr.mxu0 0.0
    %110 = vmatpush1.msra.mxu0 0.0
    %111 = vmatprep.subr.mxu0 0.0
    %112 = vmatpush1.msra.mxu0 0.0
    %113 = vmatprep.subr.mxu0 0.0
    %114 = vmatpush1.msra.mxu0 0.0
    %115 = vmatprep.subr.mxu0 0.0
    %116 = vmatpush1.msra.mxu0 0.0
    %117 = vmatprep.subr.mxu0 0.0
    %118 = vmatpush1.msra.mxu0 0.0
    %119 = vmatprep.subr.mxu0 0.0
    %120 = vmatpush1.msra.mxu0 0.0
    %121 = vmatprep.subr.mxu0 0.0
    %122 = vmatpush1.msra.mxu0 0.0
    %123 = vmatprep.subr.mxu0 0.0
    %124 = vmatpush1.msra.mxu0 0.0
    %125 = vmatprep.subr.mxu0 0.0
    %126 = vmatpush1.msra.mxu0 0.0
    %127 = vmatprep.subr.mxu0 0.0
    %128 = vmatpush1.msra.mxu0 0.0
    %129 = vmatprep.subr.mxu0 0.0
    %130 = vmatpush1.msra.mxu0 0.0
    %131 = vmatprep.subr.mxu0 0.0
    %132 = vmatpush1.msra.mxu0 0.0
    %133 = vmatprep.subr.mxu0 0.0
    %134 = vmatpush1.msra.mxu0 0.0
    %135 = vmatprep.subr.mxu0 0.0
    %136 = vmatpush1.msra.mxu0 0.0
    %137 = vmatprep.subr.mxu0 0.0
    %138 = vmatpush1.msra.mxu0 0.0
    %139 = vmatprep.subr.mxu0 0.0
    %140 = vmatpush1.msra.mxu0 0.0
    %141 = vmatprep.subr.mxu0 0.0
    %142 = vmatpush1.msra.mxu0 0.0
    %143 = vmatprep.subr.mxu0 0.0
    %144 = vmatpush1.msra.mxu0 0.0
    %145 = vmatprep.subr.mxu0 0.0
    %146 = vmatpush1.msra.mxu0 0.0
    %147 = vmatprep.subr.mxu0 0.0
    %148 = vmatpush1.msra.mxu0 0.0
    %149 = vmatprep.subr.mxu0 0.0
    %150 = vmatpush1.msra.mxu0 0.0
    %151 = vmatprep.subr.mxu0 0.0
    %152 = vmatpush1.msra.mxu0 0.0
    %153 = vmatprep.subr.mxu0 0.0
    %154 = vmatpush1.msra.mxu0 0.0
    %155 = vmatprep.subr.mxu0 0.0
    %156 = vmatpush1.msra.mxu0 0.0
    %157 = vmatprep.subr.mxu0 0.0
    %158 = vmatpush1.msra.mxu0 0.0
    %159 = vmatprep.subr.mxu0 0.0
    %160 = vmatpush1.msra.mxu0 0.0
    %161 = vmatprep.mubr.f32.mxu0 0.0
    %162 = vmatmul.mubr.f32.gmra.mrb[0].mxu0 %v91
    %v163 = vpop.f32.mrb[0].mxu0
    %v164 = vadd.f32 %v87, %v163
    %v165 = vpop.f32.mrb[0].mxu0
    %166 = vdwg.mxu0
    %v167 = vmax.f32 %v164, 0.0
    %v168 = vld [vmem:[#allocation7] sm:$0xff]
    %v169 = vld [vmem:[#allocation7 + $0x8] sm:$0xff]
    %v170 = vld [vmem:[#allocation7 + $0x10] sm:$0xff]
    %v171 = vld [vmem:[#allocation7 + $0x18] sm:$0xff]
    %v172 = vld [vmem:[#allocation7 + $0x20] sm:$0xff]
    %v173 = vld [vmem:[#allocation7 + $0x28] sm:$0xff]
    %v174 = vld [vmem:[#allocation7 + $0x30] sm:$0xff]
    %v175 = vld [vmem:[#allocation7 + $0x38] sm:$0xff]
    %v176 = vld [vmem:[#allocation7 + $0x40] sm:$0xff]
    %v177 = vld [vmem:[#allocation7 + $0x48] sm:$0xff]
    %v178 = vld [vmem:[#allocation7 + $0x50] sm:$0xff]
    %v179 = vld [vmem:[#allocation7 + $0x58] sm:$0xff]
    %v180 = vld [vmem:[#allocation7 + $0x60] sm:$0xff]
    %v181 = vld [vmem:[#allocation7 + $0x68] sm:$0xff]
    %v182 = vld [vmem:[#allocation7 + $0x70] sm:$0xff]
    %v183 = vld [vmem:[#allocation7 + $0x78] sm:$0xff]
    %v184 = vld [vmem:[%s4] sm:$0x1]
    %v186 = vlaneseq
    %v187 = vshrl.u32 %v186, 7
    %v188 = vsub.s32 0, %v187
    %v189 = vrot.slane %v184, %v188
    %191 = vmatprep.subr.mxu0 0.0
    %192 = vmatpush1.msra.mxu0 %v168
    %193 = vmatprep.subr.mxu0 0.0
    %194 = vmatpush1.msra.mxu0 %v169
    %195 = vmatprep.subr.mxu0 0.0
    %196 = vmatpush1.msra.mxu0 %v170
    %197 = vmatprep.subr.mxu0 0.0
    %198 = vmatpush1.msra.mxu0 %v171
    %199 = vmatprep.subr.mxu0 0.0
    %200 = vmatpush1.msra.mxu0 %v172
    %201 = vmatprep.subr.mxu0 0.0
    %202 = vmatpush1.msra.mxu0 %v173
    %203 = vmatprep.subr.mxu0 0.0
    %204 = vmatpush1.msra.mxu0 %v174
    %205 = vmatprep.subr.mxu0 0.0
    %206 = vmatpush1.msra.mxu0 %v175
    %207 = vmatprep.subr.mxu0 0.0
    %208 = vmatpush1.msra.mxu0 %v176
    %209 = vmatprep.subr.mxu0 0.0
    %210 = vmatpush1.msra.mxu0 %v177
    %211 = vmatprep.subr.mxu0 0.0
    %212 = vmatpush1.msra.mxu0 %v178
    %213 = vmatprep.subr.mxu0 0.0
    %214 = vmatpush1.msra.mxu0 %v179
    %215 = vmatprep.subr.mxu0 0.0
    %216 = vmatpush1.msra.mxu0 %v180
    %217 = vmatprep.subr.mxu0 0.0
    %218 = vmatpush1.msra.mxu0 %v181
    %219 = vmatprep.subr.mxu0 0.0
    %220 = vmatpush1.msra.mxu0 %v182
    %221 = vmatprep.subr.mxu0 0.0
    %222 = vmatpush1.msra.mxu0 %v183
    %223 = vmatprep.subr.mxu0 0.0
    %224 = vmatpush1.msra.mxu0 0.0
    %225 = vmatprep.subr.mxu0 0.0
    %226 = vmatpush1.msra.mxu0 0.0
    %227 = vmatprep.subr.mxu0 0.0
    %228 = vmatpush1.msra.mxu0 0.0
    %229 = vmatprep.subr.mxu0 0.0
    %230 = vmatpush1.msra.mxu0 0.0
    %231 = vmatprep.subr.mxu0 0.0
    %232 = vmatpush1.msra.mxu0 0.0
    %233 = vmatprep.subr.mxu0 0.0
    %234 = vmatpush1.msra.mxu0 0.0
    %235 = vmatprep.subr.mxu0 0.0
    %236 = vmatpush1.msra.mxu0 0.0
    %237 = vmatprep.subr.mxu0 0.0
    %238 = vmatpush1.msra.mxu0 0.0
    %239 = vmatprep.subr.mxu0 0.0
    %240 = vmatpush1.msra.mxu0 0.0
    %241 = vmatprep.subr.mxu0 0.0
    %242 = vmatpush1.msra.mxu0 0.0
    %243 = vmatprep.subr.mxu0 0.0
    %244 = vmatpush1.msra.mxu0 0.0
    %245 = vmatprep.subr.mxu0 0.0
    %246 = vmatpush1.msra.mxu0 0.0
    %247 = vmatprep.subr.mxu0 0.0
    %248 = vmatpush1.msra.mxu0 0.0
    %249 = vmatprep.subr.mxu0 0.0
    %250 = vmatpush1.msra.mxu0 0.0
    %251 = vmatprep.subr.mxu0 0.0
    %252 = vmatpush1.msra.mxu0 0.0
    %253 = vmatprep.subr.mxu0 0.0
    %254 = vmatpush1.msra.mxu0 0.0
    %255 = vmatprep.mubr.f32.mxu0 0.0
    %256 = vmatmul.mubr.f32.gmra.mrb[0].mxu0 %v167
    %v257 = vpop.f32.mrb[0].mxu0
    %v258 = vadd.f32 %v189, %v257
    %v259 = vpop.f32.mrb[0].mxu0
    %260 = vdwg.mxu0
    %v261 = vmax.f32 %v258, 0.0
    %v262 = vld [vmem:[#allocation8] sm:$0xff]
    %v263 = vld [vmem:[#allocation8 + $0x8] sm:$0xff]
    %v264 = vld [vmem:[#allocation8 + $0x10] sm:$0xff]
    %v265 = vld [vmem:[#allocation8 + $0x18] sm:$0xff]
    %v266 = vld [vmem:[#allocation8 + $0x20] sm:$0xff]
    %v267 = vld [vmem:[#allocation8 + $0x28] sm:$0xff]
    %v268 = vld [vmem:[#allocation8 + $0x30] sm:$0xff]
    %v269 = vld [vmem:[#allocation8 + $0x38] sm:$0xff]
    %v270 = vld [vmem:[#allocation8 + $0x40] sm:$0xff]
    %v271 = vld [vmem:[#allocation8 + $0x48] sm:$0xff]
    %v272 = vld [vmem:[#allocation8 + $0x50] sm:$0xff]
    %v273 = vld [vmem:[#allocation8 + $0x58] sm:$0xff]
    %v274 = vld [vmem:[#allocation8 + $0x60] sm:$0xff]
    %v275 = vld [vmem:[#allocation8 + $0x68] sm:$0xff]
    %v276 = vld [vmem:[#allocation8 + $0x70] sm:$0xff]
    %v277 = vld [vmem:[#allocation8 + $0x78] sm:$0xff]
    %v278 = vld [vmem:[%s6] sm:$0x1]
    %v280 = vlaneseq
    %v281 = vshrl.u32 %v280, 7
    %v282 = vsub.s32 0, %v281
    %v283 = vrot.slane %v278, %v282
    %285 = vmatprep.subr.mxu0 0.0
    %286 = vmatpush1.msra.mxu0 %v262
    %287 = vmatprep.subr.mxu0 0.0
    %288 = vmatpush1.msra.mxu0 %v263
    %289 = vmatprep.subr.mxu0 0.0
    %290 = vmatpush1.msra.mxu0 %v264
    %291 = vmatprep.subr.mxu0 0.0
    %292 = vmatpush1.msra.mxu0 %v265
    %293 = vmatprep.subr.mxu0 0.0
    %294 = vmatpush1.msra.mxu0 %v266
    %295 = vmatprep.subr.mxu0 0.0
    %296 = vmatpush1.msra.mxu0 %v267
    %297 = vmatprep.subr.mxu0 0.0
    %298 = vmatpush1.msra.mxu0 %v268
    %299 = vmatprep.subr.mxu0 0.0
    %300 = vmatpush1.msra.mxu0 %v269
    %301 = vmatprep.subr.mxu0 0.0
    %302 = vmatpush1.msra.mxu0 %v270
    %303 = vmatprep.subr.mxu0 0.0
    %304 = vmatpush1.msra.mxu0 %v271
    %305 = vmatprep.subr.mxu0 0.0
    %306 = vmatpush1.msra.mxu0 %v272
    %307 = vmatprep.subr.mxu0 0.0
    %308 = vmatpush1.msra.mxu0 %v273
    %309 = vmatprep.subr.mxu0 0.0
    %310 = vmatpush1.msra.mxu0 %v274
    %311 = vmatprep.subr.mxu0 0.0
    %312 = vmatpush1.msra.mxu0 %v275
    %313 = vmatprep.subr.mxu0 0.0
    %314 = vmatpush1.msra.mxu0 %v276
    %315 = vmatprep.subr.mxu0 0.0
    %316 = vmatpush1.msra.mxu0 %v277
    %317 = vmatprep.subr.mxu0 0.0
    %318 = vmatpush1.msra.mxu0 0.0
    %319 = vmatprep.subr.mxu0 0.0
    %320 = vmatpush1.msra.mxu0 0.0
    %321 = vmatprep.subr.mxu0 0.0
    %322 = vmatpush1.msra.mxu0 0.0
    %323 = vmatprep.subr.mxu0 0.0
    %324 = vmatpush1.msra.mxu0 0.0
    %325 = vmatprep.subr.mxu0 0.0
    %326 = vmatpush1.msra.mxu0 0.0
    %327 = vmatprep.subr.mxu0 0.0
    %328 = vmatpush1.msra.mxu0 0.0
    %329 = vmatprep.subr.mxu0 0.0
    %330 = vmatpush1.msra.mxu0 0.0
    %331 = vmatprep.subr.mxu0 0.0
    %332 = vmatpush1.msra.mxu0 0.0
    %333 = vmatprep.subr.mxu0 0.0
    %334 = vmatpush1.msra.mxu0 0.0
    %335 = vmatprep.subr.mxu0 0.0
    %336 = vmatpush1.msra.mxu0 0.0
    %337 = vmatprep.subr.mxu0 0.0
    %338 = vmatpush1.msra.mxu0 0.0
    %339 = vmatprep.subr.mxu0 0.0
    %340 = vmatpush1.msra.mxu0 0.0
    %341 = vmatprep.subr.mxu0 0.0
    %342 = vmatpush1.msra.mxu0 0.0
    %343 = vmatprep.subr.mxu0 0.0
    %344 = vmatpush1.msra.mxu0 0.0
    %345 = vmatprep.subr.mxu0 0.0
    %346 = vmatpush1.msra.mxu0 0.0
    %347 = vmatprep.subr.mxu0 0.0
    %348 = vmatpush1.msra.mxu0 0.0
    %349 = vmatprep.mubr.f32.mxu0 0.0
    %350 = vmatmul.mubr.f32.gmra.mrb[0].mxu0 %v261
    %v351 = vpop.f32.mrb[0].mxu0
    %v352 = vadd.f32 %v283, %v351
    %v353 = vpop.f32.mrb[0].mxu0
    %354 = vdwg.mxu0
    %vm355 = vcmask 15360
    %356 = vst.msk [vmem:[#allocation10] sm:$0xff] %vm355, %v352
    // Predicated region
    $region46: #{tpu_custom_call.1} parent=1 // pred_check
      _
    $region47: #{tpu_custom_call.1} parent=1 // pred_check_branch
      %358 = sbr.rel (0) target = $region49
    $region48: #{tpu_custom_call.1} parent=1 // pred_region
      %s360 = ssub.s32 128, 32
      %361 = vsyncadd [#allocation4], %s360
      %s362 = sshll.u32 [#allocation10], 4
      %s363 = int_to_ptr.vmem [resolvable:$true] %s362
      %368 = dma.vmem_to_hbm [thread:$0]  %s363, 32, %s7, [#allocation4], 32, 32, 2
    $region49: #{tpu_custom_call.1} parent=1 // pred_fallthru
      _
    // Predicated region
    $region50: #{tpu_custom_call.1} parent=1 // pred_check
      _
    $region51: #{tpu_custom_call.1} parent=1 // pred_check_branch
      %370 = sbr.rel (0) target = $region53
    $region52: #{tpu_custom_call.1} parent=1 // pred_region
      %371 = dma.done [#allocation4], 128
    $region53: #{tpu_custom_call.1} parent=1 // pred_fallthru
      _
    %372 = vsyncpa [#allocation3], 1
    %373 = vsyncpa [#allocation6], 1
    %374 = vsyncpa [#allocation9], 1
    %375 = vsyncpa [#allocation4], 1

</llo_original>
